<compile_context>
chip_gen: v5e
topology: v5e:2x2
jax: 0.10.0
libtpu: 0.0.40
codegen_flags: <defaults>
</compile_context>

<pallas_src>
import jax
import jax.numpy as jnp
from jax import lax
from jax.experimental import pallas as pl
from jax.experimental.pallas import tpu as pltpu

# --- model hyper-parameters (small, consistent with the module) -------------
N_EMBED = 32      # C
BLOCK_SIZE = 8    # T (max sequence length == tril buffer size)
HEAD_SIZE = 16    # H
DROPOUT = 0.0     # TODO(synk): dropout is identity here (eval mode / p == 0);
                  # stochastic dropout would need pltpu.prng_* + a mask.


def _head_kernel(x_ref, wqkv_ref, o_ref):
    """One batch-tile per grid step.

    x_ref    : (Bt, T, C)  VMEM, original (f32) dtype
    wqkv_ref : (C, 3H)     VMEM, compute dtype (fused [Wk | Wq | Wv])
    o_ref    : (Bt, T*H)   VMEM, lane-dense output slab (T*H == 128)
    """
    Bt, T, C = x_ref.shape
    H = wqkv_ref.shape[1] // 3
    cdt = wqkv_ref.dtype                 # MXU operand dtype (bf16 or f32)

    # ---- fused QKV projection: ONE matmul with M = Bt*T rows ---------------
    # Cast to the compute dtype here (in VMEM) instead of in the wrapper, so x
    # is read from HBM exactly once.
    x2d = x_ref[...].reshape(Bt * T, C).astype(cdt)
    qkv = jnp.dot(x2d, wqkv_ref[...],
                  preferred_element_type=jnp.float32)         # (Bt*T, 3H) f32
    k = qkv[:, 0 * H:1 * H].reshape(Bt, T, H)
    q = qkv[:, 1 * H:2 * H].reshape(Bt, T, H)
    v = qkv[:, 2 * H:3 * H].reshape(Bt, T, H)

    # ---- attention scores: contract head dim directly (no explicit k.T) ----
    # Note: the module scales by C ** -0.5 (embedding dim), not head_size.
    scale = jnp.float32(C) ** -0.5
    scores = jnp.einsum('bth,bsh->bts', q.astype(cdt), k.astype(cdt),
                        preferred_element_type=jnp.float32) * scale  # (Bt,T,T)

    # causal (lower-triangular) mask == tril[:T, :T]; built once at (1, T, T)
    # and broadcast (no per-batch iota filler).
    row = lax.broadcasted_iota(jnp.int32, (1, T, T), 1)
    col = lax.broadcasted_iota(jnp.int32, (1, T, T), 2)
    scores = jnp.where(col <= row, scores, -jnp.inf)

    # ---- numerically-stable softmax (f32); reciprocal on the EUP -----------
    m = jnp.max(scores, axis=-1, keepdims=True)
    p = jnp.exp(scores - m)
    w = p * pl.reciprocal(jnp.sum(p, axis=-1, keepdims=True), approx=True)

    # dropout(p=0) -> identity

    # ---- weighted sum of values; store as a lane-dense (Bt, T*H) slab ------
    out = jnp.einsum('bts,bsh->bth', w.astype(cdt), v.astype(cdt),
                     preferred_element_type=jnp.float32)      # (Bt, T, H)
    o_ref[...] = out.reshape(Bt, T * H).astype(o_ref.dtype)


def _choose_batch_tile(B, block_b, min_steps):
    """Pick a batch tile: as large as possible, sublane-aligned (multiple of 8)
    unless it covers the whole batch, and small enough to give >= min_steps
    grid steps (min_steps=2 keeps both TensorCores busy on v7x)."""
    bt = min(block_b, pl.cdiv(B, max(min_steps, 1)))
    if bt >= B:
        return B
    bt = max(8, (bt // 8) * 8)
    return min(bt, B)


def head_forward(x, wk, wq, wv, *, block_b=1024, min_steps=1,
                 compute_dtype=jnp.bfloat16):
    """x: (B, T, C); wk/wq/wv: (C, H)  ->  (B, T, H).

    block_b:       max batch elements per grid step.  Per-step VMEM is only a
                   few KiB per batch element, so ~1k-4k fits the default scoped
                   VMEM limit on all generations (v7x has the smallest VMEM:
                   64 MiB physical / ~32 MiB scoped default).
    min_steps:     lower bound on grid length; use 2 on v7x so the "parallel"
                   batch axis actually shards across both TensorCores.
    compute_dtype: dtype of the MXU operands only (bf16 recommended on all
                   generations; softmax/mask/accumulation stay in f32).
    """
    B, T, C = x.shape
    H = wk.shape[1]
    assert C == N_EMBED and T <= BLOCK_SIZE

    # Fuse the three projection weights into a single tiny (C, 3H) operand.
    wqkv = jnp.concatenate([wk, wq, wv], axis=1).astype(compute_dtype)

    bt = _choose_batch_tile(B, block_b, min_steps)
    nb = pl.cdiv(B, bt)   # ragged final block OK: batch rows are independent,
                          # out-of-range rows are masked on store.

    out2d = pl.pallas_call(
        _head_kernel,
        out_shape=jax.ShapeDtypeStruct((B, T * H), x.dtype),
        grid_spec=pltpu.PrefetchScalarGridSpec(
            num_scalar_prefetch=0,
            grid=(nb,),
            in_specs=[
                pl.BlockSpec((bt, T, C), lambda b: (b, 0, 0)),
                pl.BlockSpec((C, 3 * H), lambda b: (0, 0)),
            ],
            # Lane-dense output block: last dim = T*H = 128 -> unmasked stores.
            out_specs=pl.BlockSpec((bt, T * H), lambda b: (b, 0)),
        ),
        compiler_params=pltpu.CompilerParams(
            dimension_semantics=("parallel",)),   # batch tiles shard across TCs
    )(x, wqkv)

    return out2d.reshape(B, T, H)   # free row-major reshape in the wrapper


def reference_forward(x, wk, wq, wv):
    """Pure-JAX reference matching the PyTorch forward."""
    B, T, C = x.shape
    k = x @ wk
    q = x @ wq
    v = x @ wv
    w = (q @ jnp.swapaxes(k, -2, -1)) * (C ** -0.5)
    mask = jnp.tril(jnp.ones((T, T), dtype=bool))
    w = jnp.where(mask, w, -jnp.inf)
    w = jax.nn.softmax(w, axis=-1)
    return w @ v


if __name__ == "__main__":
    key = jax.random.PRNGKey(0)
    kx, kk, kq, kv, kx2 = jax.random.split(key, 5)

    B, T, C, H = 2, BLOCK_SIZE, N_EMBED, HEAD_SIZE
    x = jax.random.normal(kx, (B, T, C), dtype=jnp.float32)

    # Deterministic nn.Linear-style init: U(-1/sqrt(C), 1/sqrt(C)), stored
    # already transposed as (C, H).
    bound = 1.0 / (C ** 0.5)
    wk = jax.random.uniform(kk, (C, H), jnp.float32, -bound, bound)
    wq = jax.random.uniform(kq, (C, H), jnp.float32, -bound, bound)
    wv = jax.random.uniform(kv, (C, H), jnp.float32, -bound, bound)

    ref = reference_forward(x, wk, wq, wv)

    # Default path: bf16 MXU operands, f32 accumulation / softmax.
    out = jax.block_until_ready(head_forward(x, wk, wq, wv))
    assert out.shape == (B, T, H)
    assert jnp.allclose(out, ref, atol=3e-2, rtol=3e-2), "mismatch (bf16 path)"

    # f32 compute path: only the approx EUP reciprocal differs from exact.
    out_f32 = jax.block_until_ready(
        head_forward(x, wk, wq, wv, compute_dtype=jnp.float32))
    assert jnp.allclose(out_f32, ref, atol=2e-3, rtol=2e-3), "mismatch (f32 path)"

    # Multi-tile path with a ragged final block (B2 % bt != 0, no padding) and
    # the v7x-style min_steps>=2 grid split.
    B2 = 20
    x2 = jax.random.normal(kx2, (B2, T, C), dtype=jnp.float32)
    out2 = jax.block_until_ready(
        head_forward(x2, wk, wq, wv, block_b=8, min_steps=2))
    ref2 = reference_forward(x2, wk, wq, wv)
    assert out2.shape == (B2, T, H)
    assert jnp.allclose(out2, ref2, atol=3e-2, rtol=3e-2), "mismatch (tiled path)"

    print("KERNEL_OK")
</pallas_src>

<mosaic_0001>
module attributes {stable_mosaic.version = 11 : i64} {
  func.func @_head_kernel(%arg0: i32, %arg1: memref<2x8x32xf32, #tpu.memory_space<vmem>>, %arg2: memref<32x48xbf16, #tpu.memory_space<vmem>>, %arg3: memref<2x128xf32, #tpu.memory_space<vmem>>) attributes {dimension_semantics = [#tpu.dimension_semantics<parallel>], iteration_bounds = array<i64: 1>, scalar_prefetch = 0 : i64, scratch_operands = 0 : i64, tpu.core_type = #tpu.core_type<tc>, window_params = [{transform_indices = @transform_0, window_bounds = array<i64: 2, 8, 32>}, {pipeline_mode = #tpu.pipeline_mode<synchronous>, transform_indices = @transform_1, window_bounds = array<i64: 32, 48>}, {transform_indices = @transform_2, window_bounds = array<i64: 2, 128>}]} {
    %c0 = arith.constant 0 : index
    %c0_0 = arith.constant 0 : index
    %c0_1 = arith.constant 0 : index
    %0 = vector.load %arg1[%c0, %c0_0, %c0_1] : memref<2x8x32xf32, #tpu.memory_space<vmem>>, vector<2x8x32xf32>
    %1 = vector.shape_cast %0 : vector<2x8x32xf32> to vector<16x32xf32>
    %2 = arith.truncf %1 : vector<16x32xf32> to vector<16x32xbf16>
    %c0_2 = arith.constant 0 : index
    %c0_3 = arith.constant 0 : index
    %3 = vector.load %arg2[%c0_2, %c0_3] : memref<32x48xbf16, #tpu.memory_space<vmem>>, vector<32x48xbf16>
    %cst = arith.constant dense<0.000000e+00> : vector<16x48xf32>
    %4 = tpu.matmul %2, %3, %cst {dimension_numbers = #tpu.dot_dimension_numbers<[1], [0], [0], [1], [0, 0, 1, 1], [], []>} : vector<16x32xbf16>, vector<32x48xbf16>, vector<16x48xf32> -> vector<16x48xf32>
    %5 = vector.extract_strided_slice %4 {offsets = [0, 0], sizes = [16, 16], strides = [1, 1]} : vector<16x48xf32> to vector<16x16xf32>
    %6 = vector.shape_cast %5 : vector<16x16xf32> to vector<2x8x16xf32>
    %7 = vector.extract_strided_slice %4 {offsets = [0, 16], sizes = [16, 16], strides = [1, 1]} : vector<16x48xf32> to vector<16x16xf32>
    %8 = vector.shape_cast %7 : vector<16x16xf32> to vector<2x8x16xf32>
    %9 = vector.extract_strided_slice %4 {offsets = [0, 32], sizes = [16, 16], strides = [1, 1]} : vector<16x48xf32> to vector<16x16xf32>
    %10 = vector.shape_cast %9 : vector<16x16xf32> to vector<2x8x16xf32>
    %cst_4 = arith.constant 3.200000e+01 : f32
    %cst_5 = arith.constant -5.000000e-01 : f32
    %11 = math.powf %cst_4, %cst_5 : f32
    %12 = arith.truncf %8 : vector<2x8x16xf32> to vector<2x8x16xbf16>
    %13 = arith.truncf %6 : vector<2x8x16xf32> to vector<2x8x16xbf16>
    "tpu.trace_start"() <{level = 10 : i32, message = "bth,bsh->bts"}> : () -> ()
    %cst_6 = arith.constant dense<0.000000e+00> : vector<2x8x8xf32>
    %14 = tpu.matmul %12, %13, %cst_6 {dimension_numbers = #tpu.dot_dimension_numbers<[2], [2], [1], [1], [0, 0, 0, 1, 1, 1], [0], [0]>} : vector<2x8x16xbf16>, vector<2x8x16xbf16>, vector<2x8x8xf32> -> vector<2x8x8xf32>
    "tpu.trace_stop"() : () -> ()
    %15 = vector.broadcast %11 : f32 to vector<2x8x8xf32>
    %16 = arith.mulf %14, %15 : vector<2x8x8xf32>
    %17 = tpu.iota {dimensions = array<i32: 1>} : vector<1x8x8xi32>
    %18 = tpu.iota {dimensions = array<i32: 2>} : vector<1x8x8xi32>
    %19 = arith.cmpi sle, %18, %17 : vector<1x8x8xi32>
    %cst_7 = arith.constant 0xFF800000 : f32
    %20 = vector.shape_cast %19 : vector<1x8x8xi1> to vector<1x8x8xi1>
    %21 = vector.broadcast %20 : vector<1x8x8xi1> to vector<2x8x8xi1>
    %22 = vector.broadcast %cst_7 : f32 to vector<2x8x8xf32>
    %23 = arith.select %21, %16, %22 : vector<2x8x8xi1>, vector<2x8x8xf32>
    %cst_8 = arith.constant dense<0xFF800000> : vector<2x8xf32>
    %24 = vector.multi_reduction <maximumf>, %23, %cst_8 [2] : vector<2x8x8xf32> to vector<2x8xf32>
    %25 = vector.shape_cast %24 : vector<2x8xf32> to vector<2x8x1xf32>
    %26 = vector.broadcast %25 : vector<2x8x1xf32> to vector<2x8x8xf32>
    %27 = arith.subf %23, %26 : vector<2x8x8xf32>
    %28 = math.exp %27 : vector<2x8x8xf32>
    %cst_9 = arith.constant dense<0.000000e+00> : vector<2x8xf32>
    %29 = vector.multi_reduction <add>, %28, %cst_9 [2] : vector<2x8x8xf32> to vector<2x8xf32>
    %30 = vector.shape_cast %29 : vector<2x8xf32> to vector<2x8x1xf32>
    %31 = tpu.reciprocal %30 {approx = true} : vector<2x8x1xf32> -> vector<2x8x1xf32>
    %32 = vector.broadcast %31 : vector<2x8x1xf32> to vector<2x8x8xf32>
    %33 = arith.mulf %28, %32 : vector<2x8x8xf32>
    %34 = arith.truncf %33 : vector<2x8x8xf32> to vector<2x8x8xbf16>
    %35 = arith.truncf %10 : vector<2x8x16xf32> to vector<2x8x16xbf16>
    "tpu.trace_start"() <{level = 10 : i32, message = "bts,bsh->bth"}> : () -> ()
    %cst_10 = arith.constant dense<0.000000e+00> : vector<2x8x16xf32>
    %36 = tpu.matmul %34, %35, %cst_10 {dimension_numbers = #tpu.dot_dimension_numbers<[2], [1], [1], [2], [0, 0, 0, 1, 1, 2], [0], [0]>} : vector<2x8x8xbf16>, vector<2x8x16xbf16>, vector<2x8x16xf32> -> vector<2x8x16xf32>
    "tpu.trace_stop"() : () -> ()
    %37 = vector.shape_cast %36 : vector<2x8x16xf32> to vector<2x128xf32>
    %c0_11 = arith.constant 0 : index
    %c0_12 = arith.constant 0 : index
    %38 = vector.load %arg3[%c0_11, %c0_12] : memref<2x128xf32, #tpu.memory_space<vmem>>, vector<2x128xf32>
    tpu.vector_store %arg3[%c0_11, %c0_12], %37 {strides = array<i32>} : memref<2x128xf32, #tpu.memory_space<vmem>>, vector<2x128xf32>,
    return
  }
  func.func @transform_0(%arg0: i32) -> (i32, i32, i32) {
    %c0_i32 = arith.constant 0 : i32
    %c0_i32_0 = arith.constant 0 : i32
    %c0_i32_1 = arith.constant 0 : i32
    return %arg0, %c0_i32, %c0_i32_0 : i32, i32, i32
  }
  func.func @transform_1(%arg0: i32) -> (i32, i32) {
    %c0_i32 = arith.constant 0 : i32
    %c0_i32_0 = arith.constant 0 : i32
    %c0_i32_1 = arith.constant 0 : i32
    return %c0_i32, %c0_i32_0 : i32, i32
  }
  func.func @transform_2(%arg0: i32) -> (i32, i32) {
    %c0_i32 = arith.constant 0 : i32
    %c0_i32_0 = arith.constant 0 : i32
    return %arg0, %c0_i32 : i32, i32
  }
}

</mosaic_0001>

<llo_original>
// kernel: tpu_custom_call.1
$region0: #{tpu_custom_call.1}
  #allocation0 [shape = 'u32[]', space=smem, size = 0x4, offset = 0x4, fixed_abs, tag = 'smem constant byte address 0x4 - core index']
  #allocation1 [shape = 'u32[72,128]{1,0:T(1,128)}', space=vmem, size = 0x9000, scoped, tag = 'internal scratch']
  %s0 = inlined_call_operand.hbm [shape: f32[2,8,32], index: 0, kind: input, shape index: {}]
  %s1 = inlined_call_operand.hbm [shape: bf16[32,48], index: 1, kind: input, shape index: {}]
  %s2 = inlined_call_operand.hbm [shape: f32[2,128], index: 2, kind: output, shape index: {}]
  %s3 = sld [smem:[#allocation0]]
  $region26: #{tpu_custom_call.1} parent=0
    _
  %s5 = ssub.s32 1, %s3
  %s6 = scalar_select 0, %s5, %s3
  $region1: #{tpu_custom_call.1} parent=0
    #allocation2 [shape = 'u8[8192]{0}', space=vmem, size = 0x2000, scoped, tag = 'input window, operand 0, single buffered']
    #allocation3 [shape = 's32[1]{0}', space=sflag, size = 0x4, scoped, tag = 'scoped memory for tpu_custom_call.1']
    #allocation4 [shape = 's32[1]{0}', space=sflag, size = 0x4, scoped, tag = 'scoped memory for tpu_custom_call.1']
    #allocation5 [shape = 'u8[8192]{0}', space=vmem, size = 0x2000, scoped, tag = 'input window, operand 1, single buffered']
    #allocation6 [shape = 's32[1]{0}', space=sflag, size = 0x4, scoped, tag = 'scoped memory for tpu_custom_call.1']
    #allocation7 [shape = 'u8[1024]{0}', space=vmem, size = 0x400, scoped, tag = 'output window, operand 0, single buffered']
    %7 = vsyncpa [#allocation3], 0
    %8 = vsyncpa [#allocation6], 0
    %9 = vsyncpa [#allocation4], 0
    // Predicated region
    $region2: #{tpu_custom_call.1} parent=1 // pred_check
      _
    $region3: #{tpu_custom_call.1} parent=1 // pred_check_branch
      %11 = sbr.rel (0) target = $region5
    $region4: #{tpu_custom_call.1} parent=1 // pred_region
      %13 = vsyncadd [#allocation3], 0
      %s14 = sshll.u32 %s0, 4
      %s15 = int_to_ptr.hbm [resolvable:$true] %s14
      %s16 = sshll.u32 [#allocation2], 4
      %s17 = int_to_ptr.vmem [resolvable:$true] %s16
      %22 = dma.hbm_to_vmem [thread:$0]  %s15, 256, %s17, [#allocation3], 128, 128, 8
    $region5: #{tpu_custom_call.1} parent=1 // pred_fallthru
      _
    // Predicated region
    $region6: #{tpu_custom_call.1} parent=1 // pred_check
      _
    $region7: #{tpu_custom_call.1} parent=1 // pred_check_branch
      %24 = sbr.rel (0) target = $region9
    $region8: #{tpu_custom_call.1} parent=1 // pred_region
      %26 = vsyncadd [#allocation6], 0
      %s27 = sshll.u32 %s1, 4
      %s28 = int_to_ptr.hbm [resolvable:$true] %s27
      %s29 = sshll.u32 [#allocation5], 4
      %s30 = int_to_ptr.vmem [resolvable:$true] %s29
      %35 = dma.hbm_to_vmem [thread:$0]  %s28, 256, %s30, [#allocation6], 64, 64, 4
    $region9: #{tpu_custom_call.1} parent=1 // pred_fallthru
      _
    // Predicated region
    $region10: #{tpu_custom_call.1} parent=1 // pred_check
      _
    $region11: #{tpu_custom_call.1} parent=1 // pred_check_branch
      %37 = sbr.rel (0) target = $region13
    $region12: #{tpu_custom_call.1} parent=1 // pred_region
      %39 = dma.done [#allocation3], 256
    $region13: #{tpu_custom_call.1} parent=1 // pred_fallthru
      _
    // Predicated region
    $region14: #{tpu_custom_call.1} parent=1 // pred_check
      _
    $region15: #{tpu_custom_call.1} parent=1 // pred_check_branch
      %41 = sbr.rel (0) target = $region17
    $region16: #{tpu_custom_call.1} parent=1 // pred_region
      %43 = dma.done [#allocation6], 256
    $region17: #{tpu_custom_call.1} parent=1 // pred_fallthru
      _
    %v45 = vld [vmem:[#allocation2] sm:$0xff]
    %v46 = vld [vmem:[#allocation2 + $0x8] sm:$0xff]
    %v47 = vpack.c.bf16 %v46, %v45
    %v48 = vld [vmem:[#allocation5] sm:$0xf]
    %v49 = vld [vmem:[#allocation5 + $0x4] sm:$0xf]
    %v50 = vld [vmem:[#allocation5 + $0x8] sm:$0xf]
    %v51 = vld [vmem:[#allocation5 + $0xc] sm:$0xf]
    %v56 = vunpack.c.l.b16 %v48
    %v57 = vunpack.c.l.b16 %v49
    %v58 = vunpack.c.l.b16 %v50
    %v59 = vunpack.c.l.b16 %v51
    %v60 = vpack.c.b16 %v57, %v56
    %v61 = vpack.c.b16 %v59, %v58
    %vm64 = vcmask 261120
    %v66 = vsel %vm64, %v47, 0
    %68 = vmatpush.bf16.msra.mxu0 0
    %69 = vmatpush.bf16.msra.mxu0 0
    %70 = vmatpush.bf16.msra.mxu0 0
    %71 = vmatpush.bf16.msra.mxu0 0
    %72 = vmatpush.bf16.msra.mxu0 0
    %73 = vmatpush.bf16.msra.mxu0 0
    %74 = vmatpush.bf16.msra.mxu0 %v61
    %75 = vmatpush.bf16.msra.mxu0 %v60
    %76 = vmatmul.bf16.gmra.mxu0 %v66
    %v77 = vpop.f32.mrf.mxu0
    %v78 = vadd.f32 0.0, %v77
    %v79 = vpop.f32.mrf.mxu0
    %v80 = vadd.f32 0.0, %v79
    %81 = vdwg.mxu0
    %v82 = vpack.c.bf16 %v78, %v78
    %v83 = vpack.c.bf16 %v80, %v80
    %v85 = vunpack.c.l.b16 %v82
    %v86 = vpack.c.b16 %v85, %v85
    %87 = vrot.lane.b32.xlu0 %v86, 112
    %v88 = vpop.permute.xlu0 %87
    %vm89 = vcmask 130048
    %v91 = vsel %vm89, %v88, 0
    %v94 = vsel %vm89, %v82, 0
    %96 = vmatpush.bf16.xpose.msra.mxu0 0
    %97 = vmatpush.bf16.xpose.msra.mxu0 0
    %98 = vmatpush.bf16.xpose.msra.mxu0 0
    %99 = vmatpush.bf16.xpose.msra.mxu0 0
    %100 = vmatpush.bf16.xpose.msra.mxu0 0
    %101 = vmatpush.bf16.xpose.msra.mxu0 0
    %102 = vmatpush.bf16.xpose.msra.mxu0 0
    %103 = vmatpush.bf16.xpose.msra.mxu0 %v94
    %104 = vmatmul.bf16.gmra.mxu0 %v91
    %v105 = vpop.f32.mrf.mxu0
    %v106 = vadd.f32 0.0, %v105
    %v107 = vpop.f32.mrf.mxu0
    %108 = vdwg.mxu0
    %v110 = vunpack.c.l.b16 %v83
    %v111 = vpack.c.b16 %v110, %v110
    %112 = vrot.lane.b32.xlu0 %v111, 112
    %v113 = vpop.permute.xlu0 %112
    %v115 = vsel %vm89, %v113, 0
    %v118 = vsel %vm89, %v83, 0
    %120 = vmatpush.bf16.xpose.msra.mxu0 0
    %121 = vmatpush.bf16.xpose.msra.mxu0 0
    %122 = vmatpush.bf16.xpose.msra.mxu0 0
    %123 = vmatpush.bf16.xpose.msra.mxu0 0
    %124 = vmatpush.bf16.xpose.msra.mxu0 0
    %125 = vmatpush.bf16.xpose.msra.mxu0 0
    %126 = vmatpush.bf16.xpose.msra.mxu0 0
    %127 = vmatpush.bf16.xpose.msra.mxu0 %v118
    %128 = vmatmul.bf16.gmra.mxu0 %v115
    %v129 = vpop.f32.mrf.mxu0
    %v130 = vadd.f32 0.0, %v129
    %v131 = vpop.f32.mrf.mxu0
    %132 = vdwg.mxu0
    %v133 = vmul.f32 %v106, 0.17677669
    %v134 = vmul.f32 %v130, 0.17677669
    %v135 = vlaneseq
    %v136 = vshrl.u32 %v135, 7
    %v137 = vlaneseq
    %v138 = vand.u32 %v137, 127
    %vm139 = vcmp.le.s32.totalorder %v138, %v136
    %v140 = vsel %vm139, 1, 0
    %vm141 = vcmp.eq.s32.totalorder %v140, 1
    %v142 = vsel %vm141, %v133, -inf
    %v143 = vsel %vm141, %v134, -inf
    %vm144 = vcmask 64512
    %v145 = vsel %vm144, %v142, -inf
    %146 = vmax.xlane.f32.xlu0 %v145
    %v147 = vpop.xlane.xlu0 %146
    %v148 = vsel %vm144, %v143, -inf
    %149 = vmax.xlane.f32.xlu0 %v148
    %v150 = vpop.xlane.xlu0 %149
    %v151 = vsub.f32 %v142, %v147
    %v152 = vsub.f32 %v143, %v150
    %v153 = vmul.f32 %v151, 1.442695
    %v154 = vpow.pop %v153
    %v155 = vmul.f32 %v152, 1.442695
    %v156 = vpow.pop %v155
    %v157 = vsel %vm144, %v154, 0.0
    %158 = vadd.xlane.f32.xlu0 %v157
    %v159 = vpop.xlane.xlu0 %158
    %v160 = vsel %vm144, %v156, 0.0
    %161 = vadd.xlane.f32.xlu0 %v160
    %v162 = vpop.xlane.xlu0 %161
    %v163 = vrcp.pop %v159
    %v164 = vrcp.pop %v162
    %v165 = vmul.f32 %v154, %v163
    %v166 = vmul.f32 %v156, %v164
    %v167 = vpack.c.bf16 %v165, %v165
    %v168 = vpack.c.bf16 %v166, %v166
    %169 = vrot.lane.b32.xlu0 %v86, 96
    %v170 = vpop.permute.xlu0 %169
    %v172 = vsel %vm144, %v167, 0
    %vm174 = vcmask 1043456
    %v176 = vsel %vm174, %v170, 0
    %178 = vmatpush.bf16.msra.mxu0 0
    %179 = vmatpush.bf16.msra.mxu0 0
    %180 = vmatpush.bf16.msra.mxu0 0
    %181 = vmatpush.bf16.msra.mxu0 0
    %182 = vmatpush.bf16.msra.mxu0 0
    %183 = vmatpush.bf16.msra.mxu0 0
    %184 = vmatpush.bf16.msra.mxu0 0
    %185 = vmatpush.bf16.msra.mxu0 %v176
    %186 = vmatmul.bf16.gmra.mxu0 %v172
    %v187 = vpop.f32.mrf.mxu0
    %v188 = vadd.f32 0.0, %v187
    %v189 = vpop.f32.mrf.mxu0
    %190 = vdwg.mxu0
    %191 = vrot.lane.b32.xlu0 %v111, 96
    %v192 = vpop.permute.xlu0 %191
    %v194 = vsel %vm144, %v168, 0
    %v197 = vsel %vm174, %v192, 0
    %199 = vmatpush.bf16.msra.mxu0 0
    %200 = vmatpush.bf16.msra.mxu0 0
    %201 = vmatpush.bf16.msra.mxu0 0
    %202 = vmatpush.bf16.msra.mxu0 0
    %203 = vmatpush.bf16.msra.mxu0 0
    %204 = vmatpush.bf16.msra.mxu0 0
    %205 = vmatpush.bf16.msra.mxu0 0
    %206 = vmatpush.bf16.msra.mxu0 %v197
    %207 = vmatmul.bf16.gmra.mxu0 %v194
    %v208 = vpop.f32.mrf.mxu0
    %v209 = vadd.f32 0.0, %v208
    %v210 = vpop.f32.mrf.mxu0
    %211 = vdwg.mxu0
    %v212 = vrot.slane %v188, 4
    %vm213 = vcmask 1047556
    %v214 = vsel %vm213, 0.0, %v212
    %v216 = vunpack.c.l.s4 1983009808
    %v217 = vunpack.c.0.s8 %v216
    %v218 = vperm.slane %v188, %v217
    %v220 = vunpack.c.l.s4 1983009808
    %v221 = vunpack.c.0.s8 %v220
    %v222 = vperm.slane %v214, %v221
    %v223 = vrot.slane %v209, 4
    %v224 = vsel %vm213, 0.0, %v223
    %v226 = vunpack.c.l.s4 1983009808
    %v227 = vunpack.c.0.s8 %v226
    %v228 = vperm.slane %v209, %v227
    %v230 = vunpack.c.l.s4 1983009808
    %v231 = vunpack.c.0.s8 %v230
    %v232 = vperm.slane %v224, %v231
    %v233 = vrot.slane %v228, 4
    %v234 = vsel %vm213, %v233, %v218
    %v235 = vrot.slane %v218, 4
    %v236 = vsel %vm213, %v228, %v235
    %v238 = vunpack.c.l.s4 1934713408
    %v239 = vunpack.c.0.s8 %v238
    %v240 = vperm.slane %v234, %v239
    %v242 = vunpack.c.l.s4 1934713408
    %v243 = vunpack.c.0.s8 %v242
    %v244 = vperm.slane %v236, %v243
    %v245 = vrot.slane %v232, 4
    %v246 = vsel %vm213, %v245, %v222
    %v247 = vrot.slane %v222, 4
    %v248 = vsel %vm213, %v232, %v247
    %v250 = vunpack.c.l.s4 1934713408
    %v251 = vunpack.c.0.s8 %v250
    %v252 = vperm.slane %v246, %v251
    %v254 = vunpack.c.l.s4 1934713408
    %v255 = vunpack.c.0.s8 %v254
    %v256 = vperm.slane %v248, %v255
    %v257 = vrot.slane %v240, 4
    %v258 = vsel %vm213, 0.0, %v257
    %v259 = vrot.slane %v244, 4
    %v260 = vsel %vm213, 0.0, %v259
    %v261 = vrot.slane %v252, 4
    %v262 = vsel %vm213, 0.0, %v261
    %v263 = vrot.slane %v256, 4
    %v264 = vsel %vm213, 0.0, %v263
    %266 = vrot.lane.b32.xlu0 %v258, 16
    %v267 = vpop.permute.xlu0 %266
    %270 = vrot.lane.b32.xlu0 %v244, 32
    %v271 = vpop.permute.xlu0 %270
    %274 = vrot.lane.b32.xlu0 %v260, 48
    %v275 = vpop.permute.xlu0 %274
    %278 = vrot.lane.b32.xlu0 %v252, 64
    %v279 = vpop.permute.xlu0 %278
    %282 = vrot.lane.b32.xlu0 %v262, 80
    %v283 = vpop.permute.xlu0 %282
    %286 = vrot.lane.b32.xlu0 %v256, 96
    %v287 = vpop.permute.xlu0 %286
    %290 = vrot.lane.b32.xlu0 %v264, 112
    %v291 = vpop.permute.xlu0 %290
    %v293 = vsel %vm89, %v240, %v267
    %v294 = vsel %vm64, %v293, %v271
    %vm295 = vcmask 392192
    %v296 = vsel %vm295, %v294, %v275
    %vm297 = vcmask 523264
    %v298 = vsel %vm297, %v296, %v279
    %vm299 = vcmask 654336
    %v300 = vsel %vm299, %v298, %v283
    %vm301 = vcmask 785408
    %v302 = vsel %vm301, %v300, %v287
    %vm303 = vcmask 916480
    %v304 = vsel %vm303, %v302, %v291
    %305 = vst [vmem:[#allocation7] sm:$0x3] %v304
    // Predicated region
    $region18: #{tpu_custom_call.1} parent=1 // pred_check
      _
    $region19: #{tpu_custom_call.1} parent=1 // pred_check_branch
      %307 = sbr.rel (0) target = $region21
    $region20: #{tpu_custom_call.1} parent=1 // pred_region
      %309 = vsyncadd [#allocation4], 0
      %s311 = sshll.u32 [#allocation7], 4
      %s312 = int_to_ptr.vmem [resolvable:$true] %s311
      %s313 = sshll.u32 %s2, 4
      %s314 = int_to_ptr.hbm [resolvable:$true] %s313
      %316 = dma.vmem_to_hbm [thread:$0]  %s312, 32, %s314, [#allocation4]
    $region21: #{tpu_custom_call.1} parent=1 // pred_fallthru
      _
    // Predicated region
    $region22: #{tpu_custom_call.1} parent=1 // pred_check
      _
    $region23: #{tpu_custom_call.1} parent=1 // pred_check_branch
      %318 = sbr.rel (0) target = $region25
    $region24: #{tpu_custom_call.1} parent=1 // pred_region
      %320 = dma.done [#allocation4], 32
    $region25: #{tpu_custom_call.1} parent=1 // pred_fallthru
      _
    %321 = vsyncpa [#allocation3], 1
    %322 = vsyncpa [#allocation6], 1
    %323 = vsyncpa [#allocation4], 1

</llo_original>
